<compile_context>
chip_gen: v5e
topology: v5e:2x2
jax: 0.10.0
libtpu: 0.0.40
codegen_flags: <defaults>
</compile_context>

<pallas_src>
import math

import jax
import jax.numpy as jnp
from jax.experimental import pallas as pl
from jax.experimental.pallas import tpu as pltpu


def _make_kernel(k: int):
    """Kernel factory; `k` = number of sequence positions packed per row."""

    def kernel(inv_freq_ref, add_ref, o_ref):
        bt, ts, w = o_ref.shape
        # Global position of the first element of this tile's first row.
        # (program_id only at kernel top level — never inside pl.when.)
        base = (pl.program_id(0) * (ts * k)).astype(jnp.float32)
        row = jax.lax.broadcasted_iota(jnp.int32, (ts, w), 0).astype(jnp.float32)
        # angle[r, c] = pos(r, c) * inv_freq[ch(c)] + phase[ch(c)]
        #   pos(r, c) = base + r*k + c // D   (the c//D part is folded into add_ref)
        # cos(x) == sin(x + pi/2): a single transcendental per element.
        angle = (base + row * float(k)) * inv_freq_ref[...] + add_ref[...]
        enc = jnp.sin(angle).astype(o_ref.dtype)
        # Encoding is batch-invariant: compute once, broadcast across the
        # batch rows of the block, store lane-dense.
        o_ref[...] = jnp.broadcast_to(enc[None], (bt, ts, w))

    return kernel


def _packing_factor(S: int, D: int) -> int:
    """Pack k consecutive positions per row so the stored last dim k*D is a
    multiple of 128 (lane-dense, unmasked vst).  Falls back to 1 (correct,
    masked stores) when S does not split evenly."""
    if D % 128 == 0:
        return 1
    k = 128 // math.gcd(D, 128)
    return k if S % k == 0 else 1


def _pick_target_bytes() -> int:
    """Per-block byte budget.  2x(out block) must stay under the scoped VMEM
    default: 16 MiB on v5e, 32 MiB on v6e/v7x (no scratch is used)."""
    try:
        kind = (jax.devices()[0].device_kind or "").lower()
    except Exception:
        return 4 << 20
    if "v6" in kind or "v7" in kind:
        return 8 << 20
    return 4 << 20


def _choose_tiles(batch: int, rows: int, width: int, itemsize: int,
                  target_bytes: int) -> tuple[int, int]:
    """(batch_tile, row_tile) so one output block is ~target_bytes."""
    row_bytes = width * itemsize
    bt = max(1, min(batch, target_bytes // max(1, 8 * row_bytes)))
    max_rows = max(1, target_bytes // max(1, bt * row_bytes))
    if rows <= max_rows:
        # Whole packed plane fits in one block: split into two full tiles when
        # cleanly possible so both v7x TensorCores get a "parallel" tile.
        if rows % 16 == 0:
            return bt, rows // 2
        return bt, rows
    ts = max(8, (max_rows // 8) * 8)
    return bt, min(ts, rows)


def sinusoidal_positional_encoding(x: jax.Array, *, d_model: int | None = None,
                                   wavelength: float = 10000.0,
                                   target_block_bytes: int | None = None) -> jax.Array:
    """Pallas equivalent of SinusoidalPositionalEncoding.forward(x)."""
    B, S, D = x.shape
    if d_model is None:
        d_model = D  # module is built with d_model == feature dim of the input
    dtype = x.dtype
    itemsize = jnp.dtype(dtype).itemsize
    if target_block_bytes is None:
        target_block_bytes = _pick_target_bytes()

    # --- per-channel tables (match torch: index_vals[1::2] -= 1) -------------
    ch = jnp.arange(D, dtype=jnp.int32)
    even_idx = (ch - (ch % 2)).astype(jnp.float32)
    inv_freq_d = 1.0 / (jnp.float32(wavelength) ** (even_idx / jnp.float32(d_model)))
    phase_d = jnp.where(ch % 2 == 0, 0.0, jnp.pi / 2).astype(jnp.float32)

    # --- lane-dense packing: view the (S, D) plane as (rows, W=k*D) ----------
    k = _packing_factor(S, D)
    W = k * D
    rows = S // k if k > 1 else S

    col = jnp.arange(W, dtype=jnp.int32)
    inv_freq_w = jnp.tile(inv_freq_d, k).reshape(1, W)
    phase_w = jnp.tile(phase_d, k).reshape(1, W)
    pos_off_w = (col // D).astype(jnp.float32).reshape(1, W)
    # Folded additive term: (c // D) * inv_freq + phase.
    add_w = pos_off_w * inv_freq_w + phase_w

    bt, ts = _choose_tiles(B, rows, W, itemsize, target_block_bytes)
    grid = (pl.cdiv(rows, ts), pl.cdiv(B, bt))
    n_steps = grid[0] * grid[1]

    cost = pl.CostEstimate(
        flops=int(4 * n_steps * ts * W),
        transcendentals=int(n_steps * ts * W),
        bytes_accessed=int(B * S * D * itemsize),
    )

    out = pl.pallas_call(
        _make_kernel(k),
        out_shape=jax.ShapeDtypeStruct((B, rows, W), dtype),
        grid=grid,
        in_specs=[
            pl.BlockSpec((1, W), lambda s, b: (0, 0)),   # inv_freq row (resident)
            pl.BlockSpec((1, W), lambda s, b: (0, 0)),   # folded add row (resident)
        ],
        out_specs=pl.BlockSpec((bt, ts, W), lambda s, b: (b, s, 0)),
        compiler_params=pltpu.CompilerParams(
            dimension_semantics=("parallel", "parallel")),
        cost_estimate=cost,
    )(inv_freq_w, add_w)

    # Row-major (rows, W) == row-major (S, D): free metadata reshape.
    return out.reshape(B, S, D)


def _reference(x: jax.Array, d_model: int, wavelength: float = 10000.0) -> jax.Array:
    """Pure-JAX port of the PyTorch forward, for correctness checking."""
    B, S, D = x.shape
    positions = jnp.arange(S, dtype=jnp.float32).reshape(-1, 1)
    index_vals = jnp.arange(D)
    index_vals = index_vals.at[1::2].add(-1)
    enc = jnp.zeros((S, D), dtype=jnp.float32)
    enc = enc.at[:, ::2].set(
        jnp.sin(positions / wavelength ** (index_vals[::2] / d_model)))
    enc = enc.at[:, 1::2].set(
        jnp.cos(positions / wavelength ** (index_vals[1::2] / d_model)))
    return jnp.broadcast_to(enc[None], (B, S, D)).astype(x.dtype)


if __name__ == "__main__":
    key = jax.random.PRNGKey(0)
    B, S, D = 2, 8, 32          # batch, seq, d_model (small demo shapes)
    x = jax.random.normal(key, (B, S, D), dtype=jnp.float32)

    out = jax.block_until_ready(sinusoidal_positional_encoding(x, d_model=D))
    ref = _reference(x, d_model=D)

    assert out.shape == x.shape and out.dtype == x.dtype
    assert jnp.allclose(out, ref, atol=1e-5, rtol=1e-5), "mismatch vs reference"

    print("KERNEL_OK")
</pallas_src>

<mosaic_0001>
module attributes {stable_mosaic.version = 11 : i64} {
  func.func @kernel(%arg0: i32, %arg1: i32, %arg2: memref<1x128xf32, #tpu.memory_space<vmem>>, %arg3: memref<1x128xf32, #tpu.memory_space<vmem>>, %arg4: memref<2x2x128xf32, #tpu.memory_space<vmem>>) attributes {dimension_semantics = [#tpu.dimension_semantics<parallel>, #tpu.dimension_semantics<parallel>], iteration_bounds = array<i64: 1, 1>, scalar_prefetch = 0 : i64, scratch_operands = 0 : i64, tpu.core_type = #tpu.core_type<tc>, window_params = [{pipeline_mode = #tpu.pipeline_mode<synchronous>, transform_indices = @transform_0, window_bounds = array<i64: 1, 128>}, {pipeline_mode = #tpu.pipeline_mode<synchronous>, transform_indices = @transform_1, window_bounds = array<i64: 1, 128>}, {transform_indices = @transform_2, window_bounds = array<i64: 2, 2, 128>}]} {
    %c8_i32 = arith.constant 8 : i32
    %0 = arith.muli %arg0, %c8_i32 : i32
    %1 = arith.sitofp %0 : i32 to f32
    %2 = tpu.iota {dimensions = array<i32: 0>} : vector<2x128xi32>
    %3 = arith.sitofp %2 : vector<2x128xi32> to vector<2x128xf32>
    %cst = arith.constant 4.000000e+00 : f32
    %4 = vector.broadcast %cst : f32 to vector<2x128xf32>
    %5 = arith.mulf %3, %4 : vector<2x128xf32>
    %6 = vector.broadcast %1 : f32 to vector<2x128xf32>
    %7 = arith.addf %6, %5 : vector<2x128xf32>
    %c0 = arith.constant 0 : index
    %c0_0 = arith.constant 0 : index
    %8 = vector.load %arg2[%c0, %c0_0] : memref<1x128xf32, #tpu.memory_space<vmem>>, vector<1x128xf32>
    %9 = vector.broadcast %8 : vector<1x128xf32> to vector<2x128xf32>
    %10 = arith.mulf %7, %9 : vector<2x128xf32>
    %c0_1 = arith.constant 0 : index
    %c0_2 = arith.constant 0 : index
    %11 = vector.load %arg3[%c0_1, %c0_2] : memref<1x128xf32, #tpu.memory_space<vmem>>, vector<1x128xf32>
    %12 = vector.broadcast %11 : vector<1x128xf32> to vector<2x128xf32>
    %13 = arith.addf %10, %12 : vector<2x128xf32>
    %14 = math.sin %13 : vector<2x128xf32>
    %15 = vector.shape_cast %14 : vector<2x128xf32> to vector<1x2x128xf32>
    %16 = vector.shape_cast %15 : vector<1x2x128xf32> to vector<1x2x128xf32>
    %17 = vector.broadcast %16 : vector<1x2x128xf32> to vector<2x2x128xf32>
    %c0_3 = arith.constant 0 : index
    %c0_4 = arith.constant 0 : index
    %c0_5 = arith.constant 0 : index
    %18 = vector.load %arg4[%c0_3, %c0_4, %c0_5] : memref<2x2x128xf32, #tpu.memory_space<vmem>>, vector<2x2x128xf32>
    tpu.vector_store %arg4[%c0_3, %c0_4, %c0_5], %17 {strides = array<i32>} : memref<2x2x128xf32, #tpu.memory_space<vmem>>, vector<2x2x128xf32>,
    return
  }
  func.func @transform_0(%arg0: i32, %arg1: i32) -> (i32, i32) {
    %c0_i32 = arith.constant 0 : i32
    %c0_i32_0 = arith.constant 0 : i32
    %c0_i32_1 = arith.constant 0 : i32
    return %c0_i32, %c0_i32_0 : i32, i32
  }
  func.func @transform_1(%arg0: i32, %arg1: i32) -> (i32, i32) {
    %c0_i32 = arith.constant 0 : i32
    %c0_i32_0 = arith.constant 0 : i32
    %c0_i32_1 = arith.constant 0 : i32
    return %c0_i32, %c0_i32_0 : i32, i32
  }
  func.func @transform_2(%arg0: i32, %arg1: i32) -> (i32, i32, i32) {
    %c0_i32 = arith.constant 0 : i32
    %c0_i32_0 = arith.constant 0 : i32
    return %arg1, %arg0, %c0_i32 : i32, i32, i32
  }
}

</mosaic_0001>

<llo_original>
// kernel: tpu_custom_call.1
$region0: #{tpu_custom_call.1}
  #allocation0 [shape = 'u32[]', space=smem, size = 0x4, offset = 0x4, fixed_abs, tag = 'smem constant byte address 0x4 - core index']
  #allocation1 [shape = 'u32[72,128]{1,0:T(1,128)}', space=vmem, size = 0x9000, scoped, tag = 'internal scratch']
  %s0 = inlined_call_operand.hbm [shape: f32[1,128], index: 0, kind: input, shape index: {}]
  %s1 = inlined_call_operand.hbm [shape: f32[1,128], index: 1, kind: input, shape index: {}]
  %s2 = inlined_call_operand.hbm [shape: f32[2,2,128], index: 2, kind: output, shape index: {}]
  %s3 = sld [smem:[#allocation0]]
  $region26: #{tpu_custom_call.1} parent=0
    _
  %s5 = ssub.s32 1, %s3
  %s6 = scalar_select 0, %s5, %s3
  $region1: #{tpu_custom_call.1} parent=0
    #allocation2 [shape = 'u8[512]{0}', space=vmem, size = 0x400, scoped, tag = 'input window, operand 0, single buffered']
    #allocation3 [shape = 's32[1]{0}', space=sflag, size = 0x4, scoped, tag = 'scoped memory for tpu_custom_call.1']
    #allocation4 [shape = 's32[1]{0}', space=sflag, size = 0x4, scoped, tag = 'scoped memory for tpu_custom_call.1']
    #allocation5 [shape = 'u8[512]{0}', space=vmem, size = 0x400, scoped, tag = 'input window, operand 1, single buffered']
    #allocation6 [shape = 's32[1]{0}', space=sflag, size = 0x4, scoped, tag = 'scoped memory for tpu_custom_call.1']
    #allocation7 [shape = 'u8[2048]{0}', space=vmem, size = 0x800, scoped, tag = 'output window, operand 0, single buffered']
    %7 = vsyncpa [#allocation3], 0
    %8 = vsyncpa [#allocation6], 0
    %9 = vsyncpa [#allocation4], 0
    // Predicated region
    $region2: #{tpu_custom_call.1} parent=1 // pred_check
      _
    $region3: #{tpu_custom_call.1} parent=1 // pred_check_branch
      %11 = sbr.rel (0) target = $region5
    $region4: #{tpu_custom_call.1} parent=1 // pred_region
      %13 = vsyncadd [#allocation3], 0
      %s15 = sshll.u32 %s0, 4
      %s16 = int_to_ptr.hbm [resolvable:$true] %s15
      %s17 = sshll.u32 [#allocation2], 4
      %s18 = int_to_ptr.vmem [resolvable:$true] %s17
      %20 = dma.hbm_to_vmem [thread:$0]  %s16, 16, %s18, [#allocation3]
    $region5: #{tpu_custom_call.1} parent=1 // pred_fallthru
      _
    // Predicated region
    $region6: #{tpu_custom_call.1} parent=1 // pred_check
      _
    $region7: #{tpu_custom_call.1} parent=1 // pred_check_branch
      %22 = sbr.rel (0) target = $region9
    $region8: #{tpu_custom_call.1} parent=1 // pred_region
      %24 = vsyncadd [#allocation6], 0
      %s26 = sshll.u32 %s1, 4
      %s27 = int_to_ptr.hbm [resolvable:$true] %s26
      %s28 = sshll.u32 [#allocation5], 4
      %s29 = int_to_ptr.vmem [resolvable:$true] %s28
      %31 = dma.hbm_to_vmem [thread:$0]  %s27, 16, %s29, [#allocation6]
    $region9: #{tpu_custom_call.1} parent=1 // pred_fallthru
      _
    // Predicated region
    $region10: #{tpu_custom_call.1} parent=1 // pred_check
      _
    $region11: #{tpu_custom_call.1} parent=1 // pred_check_branch
      %33 = sbr.rel (0) target = $region13
    $region12: #{tpu_custom_call.1} parent=1 // pred_region
      %35 = dma.done [#allocation3], 16
    $region13: #{tpu_custom_call.1} parent=1 // pred_fallthru
      _
    // Predicated region
    $region14: #{tpu_custom_call.1} parent=1 // pred_check
      _
    $region15: #{tpu_custom_call.1} parent=1 // pred_check_branch
      %37 = sbr.rel (0) target = $region17
    $region16: #{tpu_custom_call.1} parent=1 // pred_region
      %39 = dma.done [#allocation6], 16
    $region17: #{tpu_custom_call.1} parent=1 // pred_fallthru
      _
    %s40 = smul.u32 0, 8
    %s41 = scvt.s32.f32 %s40
    %v42 = vlaneseq
    %v43 = vshrl.u32 %v42, 7
    %v44 = vcvt.s32.f32 %v43
    %v45 = vmul.f32 %v44, 4.0
    %v46 = vstv %s41
    %v47 = vadd.f32 %v46, %v45
    %v48 = vld [vmem:[#allocation2] sm:$0x1]
    %v50 = vperm.slane %v48, 0
    %v52 = vmul.f32 %v47, %v50
    %v53 = vld [vmem:[#allocation5] sm:$0x1]
    %v55 = vperm.slane %v53, 0
    %v57 = vadd.f32 %v52, %v55
    %v58 = vand.u32 2147483647, %v57
    %vm59 = vcmp.le.f32.partialorder %v58, 0.7853982
    %vm60 = vcmp.lt.s32.totalorder %v57, 0
    %v61 = vand.u32 %v57, 2139095040
    %v62 = vshrl.u32 %v61, 23
    %v63 = vsub.s32 %v62, 127
    %v64 = vand.u32 2147483647, %v57
    %v65 = vand.u32 %v64, 8388607
    %v66 = vor.u32 %v65, 8388608
    %v67 = vsub.s32 0, %v66
    %v68 = vadd.s32 %v63, 1
    %vm69 = vcmp.gt.s32.totalorder %v68, 0
    %v70 = vsel %vm69, %v68, 0
    %v71 = vshrl.u32 %v70, 5
    %v72 = vand.u32 %v70, 31
    %v73 = vsub.s32 32, %v72
    %v74 = vshrl.u32 683565275, %v73
    %v75 = vshll.u32 683565275, %v72
    %v76 = vshrl.u32 2475754826, %v73
    %v77 = vor.u32 %v75, %v76
    %v78 = vshll.u32 2475754826, %v72
    %v79 = vshrl.u32 2131351028, %v73
    %v80 = vor.u32 %v78, %v79
    %v81 = vshll.u32 2131351028, %v72
    %v82 = vshrl.u32 2102212464, %v73
    %v83 = vor.u32 %v81, %v82
    %v84 = vshll.u32 2102212464, %v72
    %v85 = vshrl.u32 920167782, %v73
    %v86 = vor.u32 %v84, %v85
    %v87 = vshll.u32 920167782, %v72
    %v88 = vshrl.u32 1326507024, %v73
    %v89 = vor.u32 %v87, %v88
    %vm90 = vcmp.lt.s32.totalorder %v71, 1
    %vm91 = vcmp.lt.s32.totalorder %v71, 2
    %vm92 = vcmp.lt.s32.totalorder %v71, 3
    %vm93 = vcmp.lt.s32.totalorder %v71, 4
    %v94 = vsel %vm90, %v74, %v77
    %v95 = vsel %vm93, %v83, 2102212464
    %v96 = vsel %vm92, %v80, %v95
    %v97 = vsel %vm91, %v94, %v96
    %v98 = vsel %vm90, %v77, %v80
    %v99 = vsel %vm93, %v86, 920167782
    %v100 = vsel %vm92, %v83, %v99
    %v101 = vsel %vm91, %v98, %v100
    %v102 = vsel %vm90, %v80, %v83
    %v103 = vsel %vm93, %v89, 1326507024
    %v104 = vsel %vm92, %v86, %v103
    %v105 = vsel %vm91, %v102, %v104
    %v106 = vshll.u32 %v66, 8
    %v107 = vand.u32 %v106, 65535
    %v108 = vshrl.u32 %v106, 16
    %v109 = vand.u32 %v105, 65535
    %v110 = vshrl.u32 %v105, 16
    %v111 = vmul.u32 %v107, %v109
    %v112 = vmul.u32 %v107, %v110
    %v113 = vmul.u32 %v108, %v109
    %v114 = vmul.u32 %v108, %v110
    %v115 = vshll.u32 %v112, 16
    %v116 = vshrl.u32 %v112, 16
    %v117 = vshll.u32 %v113, 16
    %v118 = vshrl.u32 %v113, 16
    %vm119 = vc.u32 %v111, %v115
    %v120 = vsel %vm119, 1, 0
    %v121 = vadd.s32 %v111, %v115
    %v122 = vadd.s32 %v114, %v120
    %vm123 = vc.u32 %v121, %v117
    %v124 = vsel %vm123, 1, 0
    %v125 = vadd.s32 %v121, %v117
    %v126 = vadd.s32 %v122, %v124
    %v127 = vadd.s32 %v126, %v116
    %v128 = vadd.s32 %v127, %v118
    %v129 = vand.u32 %v106, 65535
    %v130 = vshrl.u32 %v106, 16
    %v131 = vand.u32 %v101, 65535
    %v132 = vshrl.u32 %v101, 16
    %v133 = vmul.u32 %v129, %v131
    %v134 = vmul.u32 %v129, %v132
    %v135 = vmul.u32 %v130, %v131
    %v136 = vmul.u32 %v130, %v132
    %v137 = vshll.u32 %v134, 16
    %v138 = vshrl.u32 %v134, 16
    %v139 = vshll.u32 %v135, 16
    %v140 = vshrl.u32 %v135, 16
    %vm141 = vc.u32 %v133, %v137
    %v142 = vsel %vm141, 1, 0
    %v143 = vadd.s32 %v133, %v137
    %v144 = vadd.s32 %v136, %v142
    %vm145 = vc.u32 %v143, %v139
    %v146 = vsel %vm145, 1, 0
    %v147 = vadd.s32 %v143, %v139
    %v148 = vadd.s32 %v144, %v146
    %v149 = vadd.s32 %v148, %v138
    %v150 = vadd.s32 %v149, %v140
    %v151 = vmul.u32 %v106, %v97
    %v152 = vadd.s32 %v128, %v147
    %vm153 = vc.u32 %v128, %v147
    %v154 = vadd.s32 %v150, 1
    %v155 = vsel %vm153, %v154, %v150
    %v156 = vadd.s32 %v151, %v155
    %v157 = vadd.s32 %v156, 536870912
    %v158 = vshrl.u32 %v157, 30
    %v159 = vshll.u32 %v158, 30
    %v160 = vsub.s32 %v156, %v159
    %vm161 = vcmp.lt.s32.totalorder %v160, 0
    %v162 = vsub.s32 0, %v160
    %v163 = vsel %vm161, %v162, %v160
    %v164 = vclz %v163
    %v165 = vsub.s32 %v164, 2
    %vm166 = vcmp.gt.s32.totalorder 0, %v165
    %v167 = vsel %vm166, 0, %v165
    %v168 = vsub.s32 32, %v167
    %v169 = vshll.u32 %v160, %v167
    %v170 = vshrl.u32 %v152, %v168
    %v171 = vor.u32 %v169, %v170
    %v172 = vsub.s32 4294967266, %v167
    %v173 = vadd.s32 %v172, 127
    %v174 = vshll.u32 %v173, 23
    %v175 = vor.u32 4788187, %v174
    %v176 = vand.u32 2147483647, %v175
    %v178 = vcvt.s32.f32 %v171
    %v179 = vmul.f32 %v178, %v176
    %v180 = vxor.u32 %v179, 2147483648
    %v181 = vsel %vm60, %v180, %v179
    %v182 = vsub.s32 4, %v158
    %v183 = vsel %vm60, %v182, %v158
    %v184 = vsel %vm59, %v57, %v181
    %v185 = vsel %vm59, 0, %v183
    %v186 = vmul.f32 %v184, %v184
    %v187 = vmul.f32 %v186, -0.001358992
    %v188 = vadd.f32 %v187, 0.041655596
    %v189 = vmul.f32 %v186, %v188
    %v190 = vadd.f32 %v189, -0.4999988
    %v191 = vmul.f32 %v186, %v190
    %v192 = vadd.f32 1.0, %v191
    %v193 = vmul.f32 %v184, %v184
    %v194 = vmul.f32 %v193, -0.00019511016
    %v195 = vadd.f32 %v194, 0.008332121
    %v196 = vmul.f32 %v193, %v195
    %v197 = vadd.f32 %v196, -0.16666654
    %v198 = vmul.f32 %v193, %v197
    %v199 = vadd.f32 %v198, 1.0
    %v200 = vmul.f32 %v199, %v184
    %vm201 = vweird.f32 %v57
    %v202 = vadd.s32 %v185, 3
    %v203 = vand.u32 %v202, 3
    %vm204 = vcmp.lt.s32.totalorder %v203, 2
    %vm205 = vcmp.eq.s32.totalorder %v203, 0
    %v206 = vxor.u32 %v200, 2147483648
    %v207 = vsel %vm205, %v192, %v206
    %vm208 = vcmp.eq.s32.totalorder %v203, 2
    %v209 = vxor.u32 %v192, 2147483648
    %v210 = vsel %vm208, %v209, %v200
    %v211 = vsel %vm204, %v207, %v210
    %v212 = vsel %vm201, nan, %v211
    %213 = vst [vmem:[#allocation7] sm:$0x3] %v212
    %214 = vst [vmem:[#allocation7 + $0x2] sm:$0x3] %v212
    // Predicated region
    $region18: #{tpu_custom_call.1} parent=1 // pred_check
      _
    $region19: #{tpu_custom_call.1} parent=1 // pred_check_branch
      %216 = sbr.rel (0) target = $region21
    $region20: #{tpu_custom_call.1} parent=1 // pred_region
      %218 = vsyncadd [#allocation4], 0
      %s219 = sshll.u32 [#allocation7], 4
      %s220 = int_to_ptr.vmem [resolvable:$true] %s219
      %s221 = sshll.u32 %s2, 4
      %s222 = int_to_ptr.hbm [resolvable:$true] %s221
      %227 = dma.vmem_to_hbm [thread:$0]  %s220, 64, %s222, [#allocation4], 32, 32, 2
    $region21: #{tpu_custom_call.1} parent=1 // pred_fallthru
      _
    // Predicated region
    $region22: #{tpu_custom_call.1} parent=1 // pred_check
      _
    $region23: #{tpu_custom_call.1} parent=1 // pred_check_branch
      %229 = sbr.rel (0) target = $region25
    $region24: #{tpu_custom_call.1} parent=1 // pred_region
      %231 = dma.done [#allocation4], 64
    $region25: #{tpu_custom_call.1} parent=1 // pred_fallthru
      _
    %232 = vsyncpa [#allocation3], 1
    %233 = vsyncpa [#allocation6], 1
    %234 = vsyncpa [#allocation4], 1

</llo_original>
